<compile_context>
chip_gen: v7x
topology: tpu7x:2x2x1
jax: 0.10.0
libtpu: 0.0.40
codegen_flags: <defaults>
</compile_context>

<pallas_src>
import functools

import jax
import jax.numpy as jnp
from jax.experimental import pallas as pl
from jax.experimental.pallas import tpu as pltpu


def _softplus(x):
    # Numerically stable softplus. Matches torch.nn.Softplus(beta=1, threshold=20) to
    # f32 precision: for x > 20, log1p(exp(-x)) < 3e-9, below f32 resolution of x.
    return jnp.maximum(x, 0.0) + jnp.log1p(jnp.exp(-jnp.abs(x)))


def net_kernel(xz_ref, wcomb_ref, bt_ref, wlt_ref, bfused_ref, o_ref, *, hidden_dim):
    # One fused MXU pass over the block-diagonal combined weight:
    #   lanes [0:H]   -> x @ W_text.T          (pre-softplus hidden, bias not yet added)
    #   lanes [H:H+C] -> features @ W_feat_fused (feature-branch contribution)
    m = jnp.dot(xz_ref[...], wcomb_ref[...], preferred_element_type=jnp.float32)

    h = _softplus(m[:, :hidden_dim] + bt_ref[...])          # (TB, H), f32 on VPU/EUP
    feat_contrib = m[:, hidden_dim:]                          # (TB, C), lane extract (XLU)

    out = (jnp.dot(h.astype(wlt_ref.dtype), wlt_ref[...],
                   preferred_element_type=jnp.float32)
           + feat_contrib
           + bfused_ref[...])
    o_ref[...] = out.astype(o_ref.dtype)


def _round_up(n, m):
    return ((n + m - 1) // m) * m


def net_forward(x, features, params, *, compute_dtype=jnp.bfloat16, block_rows=4096):
    """x: (B, text_feature_num), features: (B, additional_feature_num) -> (B, classes_num)."""
    B, T = x.shape
    A = features.shape[1]
    H = params["b_text"].shape[-1]
    C = params["b_last"].shape[-1]

    # Batch tile: multiple of 8 (sublane), capped at block_rows, and sized so that the
    # grid has >=2 steps whenever B allows (v7x dual-TC sharding of the parallel axis).
    TB = min(block_rows, max(8, _round_up(pl.cdiv(B, 2), 8)))
    grid_steps = pl.cdiv(B, TB)
    B_pad = grid_steps * TB

    # ---- weight prep (wrapper-side, runs once per call under jit) ----
    f32 = jnp.float32
    w_text_t = params["w_text"].T.astype(f32)                       # (T, H)
    w_last_text = params["w_last"][:, :H].T.astype(compute_dtype)   # (H, C)
    w_last_feat = params["w_last"][:, H:].T.astype(f32)             # (H, C)
    # Fold the activation-free feature branch: Linear(A->H) . (H->C half of fc_last).
    w_feat_fused = params["w_feat"].T.astype(f32) @ w_last_feat     # (A, C)
    b_text = params["b_text"].reshape(1, H).astype(f32)             # (1, H)
    b_fused = (params["b_feat"].astype(f32) @ w_last_feat
               + params["b_last"].astype(f32)).reshape(1, C)        # (1, C)

    # Block-diagonal combined weight: (T+A, H+C).
    w_comb = jnp.zeros((T + A, H + C), f32)
    w_comb = w_comb.at[:T, :H].set(w_text_t)
    w_comb = w_comb.at[T:, H:].set(w_feat_fused)
    w_comb = w_comb.astype(compute_dtype)

    # Single combined operand, zero-padded to a whole number of tiles (avoids feeding
    # undefined rows into exp/log1p in a partial final block).
    xz = jnp.concatenate([x, features], axis=1).astype(compute_dtype)   # (B, T+A)
    if B_pad != B:
        xz = jnp.pad(xz, ((0, B_pad - B), (0, 0)))

    # VMEM budget from actual buffer needs (lane-padded to 128, double-buffered tiles),
    # not the physical maximum.
    lane = 128
    in_bytes = TB * lane * jnp.dtype(compute_dtype).itemsize
    out_bytes = TB * lane * 4
    weight_bytes = 512 * 1024                      # generous for the tiny resident weights
    vmem_limit = 2 * in_bytes + 2 * out_bytes + weight_bytes + (2 << 20)
    vmem_limit = int(min(max(vmem_limit, 4 << 20), 48 << 20))

    batch_tiled = lambda shape: pl.BlockSpec(shape, lambda i: (i, 0))
    resident = lambda shape: pl.BlockSpec(shape, lambda i: (0, 0))

    out_padded = pl.pallas_call(
        functools.partial(net_kernel, hidden_dim=H),
        out_shape=jax.ShapeDtypeStruct((B_pad, C), jnp.float32),
        grid=(grid_steps,),
        in_specs=[
            batch_tiled((TB, T + A)),   # concat([x, features])
            resident((T + A, H + C)),   # block-diagonal combined weight
            resident((1, H)),           # b_text
            resident((H, C)),           # w_last[:, :H].T
            resident((1, C)),           # fused bias
        ],
        out_specs=batch_tiled((TB, C)),
        compiler_params=pltpu.CompilerParams(
            dimension_semantics=("parallel",),
            vmem_limit_bytes=vmem_limit,
        ),
    )(xz, w_comb, b_text, w_last_text, b_fused)

    return out_padded[:B]


def net_reference(x, features, params):
    """Pure-JAX f32 reference matching the PyTorch forward."""
    text_x = _softplus(x @ params["w_text"].T + params["b_text"])
    feat_x = features @ params["w_feat"].T + params["b_feat"]
    cat = jnp.concatenate([text_x, feat_x], axis=1)
    return cat @ params["w_last"].T + params["b_last"]


def init_params(key, classes_num, text_feature_num, additional_feature_num, hidden_dim=50):
    ks = jax.random.split(key, 6)

    def uni(k, shape, fan_in):
        bound = 1.0 / jnp.sqrt(fan_in)
        return jax.random.uniform(k, shape, jnp.float32, -bound, bound)

    return {
        "w_text": uni(ks[0], (hidden_dim, text_feature_num), text_feature_num),
        "b_text": uni(ks[1], (hidden_dim,), text_feature_num),
        "w_feat": uni(ks[2], (hidden_dim, additional_feature_num), additional_feature_num),
        "b_feat": uni(ks[3], (hidden_dim,), additional_feature_num),
        "w_last": uni(ks[4], (classes_num, 2 * hidden_dim), 2 * hidden_dim),
        "b_last": uni(ks[5], (classes_num,), 2 * hidden_dim),
    }


if __name__ == "__main__":
    text_feature_num = 32
    additional_feature_num = 16
    classes_num = 4

    key = jax.random.PRNGKey(0)
    kx, kf, kp = jax.random.split(key, 3)
    params = init_params(kp, classes_num, text_feature_num, additional_feature_num)

    # Small single-tile case.
    B = 8
    x = jax.random.normal(kx, (B, text_feature_num), jnp.float32)
    features = jax.random.normal(kf, (B, additional_feature_num), jnp.float32)
    ref = net_reference(x, features, params)

    # f32 path: validates the kernel + algebraic folds (MXU f32 multi-pass rounding only).
    out_f32 = jax.block_until_ready(
        net_forward(x, features, params, compute_dtype=jnp.float32))
    assert out_f32.shape == (B, classes_num)
    assert jnp.allclose(out_f32, ref, atol=1e-4, rtol=1e-4), "f32 kernel mismatch vs reference"

    # bf16 path (default / production): relaxed tolerance for bf16 operand rounding.
    out_bf16 = jax.block_until_ready(net_forward(x, features, params))
    assert out_bf16.shape == (B, classes_num)
    assert jnp.allclose(out_bf16, ref, atol=5e-2, rtol=5e-2), "bf16 kernel mismatch vs reference"

    # Multi-step grid + partial-tile padding path (grid=2, padded rows sliced off).
    B2 = 300
    kx2, kf2 = jax.random.split(jax.random.PRNGKey(1), 2)
    x2 = jax.random.normal(kx2, (B2, text_feature_num), jnp.float32)
    f2 = jax.random.normal(kf2, (B2, additional_feature_num), jnp.float32)
    ref2 = net_reference(x2, f2, params)
    out2 = jax.block_until_ready(
        net_forward(x2, f2, params, compute_dtype=jnp.float32))
    assert out2.shape == (B2, classes_num)
    assert jnp.allclose(out2, ref2, atol=1e-4, rtol=1e-4), "multi-tile kernel mismatch"

    print("KERNEL_OK")
</pallas_src>

<mosaic_0001>
module attributes {stable_mosaic.version = 11 : i64} {
  func.func @net_kernel(%arg0: i32, %arg1: memref<8x48xf32, #tpu.memory_space<vmem>>, %arg2: memref<48x54xf32, #tpu.memory_space<vmem>>, %arg3: memref<1x50xf32, #tpu.memory_space<vmem>>, %arg4: memref<50x4xf32, #tpu.memory_space<vmem>>, %arg5: memref<1x4xf32, #tpu.memory_space<vmem>>, %arg6: memref<8x4xf32, #tpu.memory_space<vmem>>) attributes {dimension_semantics = [#tpu.dimension_semantics<parallel>], iteration_bounds = array<i64: 1>, scalar_prefetch = 0 : i64, scratch_operands = 0 : i64, tpu.core_type = #tpu.core_type<tc>, window_params = [{transform_indices = @transform_0, window_bounds = array<i64: 8, 48>}, {pipeline_mode = #tpu.pipeline_mode<synchronous>, transform_indices = @transform_1, window_bounds = array<i64: 48, 54>}, {pipeline_mode = #tpu.pipeline_mode<synchronous>, transform_indices = @transform_2, window_bounds = array<i64: 1, 50>}, {pipeline_mode = #tpu.pipeline_mode<synchronous>, transform_indices = @transform_3, window_bounds = array<i64: 50, 4>}, {pipeline_mode = #tpu.pipeline_mode<synchronous>, transform_indices = @transform_4, window_bounds = array<i64: 1, 4>}, {transform_indices = @transform_5, window_bounds = array<i64: 8, 4>}]} {
    %c0 = arith.constant 0 : index
    %c0_0 = arith.constant 0 : index
    %0 = vector.load %arg1[%c0, %c0_0] : memref<8x48xf32, #tpu.memory_space<vmem>>, vector<8x48xf32>
    %c0_1 = arith.constant 0 : index
    %c0_2 = arith.constant 0 : index
    %1 = vector.load %arg2[%c0_1, %c0_2] : memref<48x54xf32, #tpu.memory_space<vmem>>, vector<48x54xf32>
    %cst = arith.constant dense<0.000000e+00> : vector<8x54xf32>
    %2 = tpu.matmul %0, %1, %cst {dimension_numbers = #tpu.dot_dimension_numbers<[1], [0], [0], [1], [0, 0, 1, 1], [], []>} : vector<8x48xf32>, vector<48x54xf32>, vector<8x54xf32> -> vector<8x54xf32>
    %3 = vector.extract_strided_slice %2 {offsets = [0, 0], sizes = [8, 50], strides = [1, 1]} : vector<8x54xf32> to vector<8x50xf32>
    %c0_3 = arith.constant 0 : index
    %c0_4 = arith.constant 0 : index
    %4 = vector.load %arg3[%c0_3, %c0_4] : memref<1x50xf32, #tpu.memory_space<vmem>>, vector<1x50xf32>
    %5 = vector.broadcast %4 : vector<1x50xf32> to vector<8x50xf32>
    %6 = arith.addf %3, %5 : vector<8x50xf32>
    %cst_5 = arith.constant 0.000000e+00 : f32
    %7 = vector.broadcast %cst_5 : f32 to vector<8x50xf32>
    %8 = arith.maximumf %6, %7 : vector<8x50xf32>
    %9 = math.absf %6 : vector<8x50xf32>
    %cst_6 = arith.constant 0.000000e+00 : f32
    %10 = vector.broadcast %cst_6 : f32 to vector<8x50xf32>
    %11 = arith.subf %10, %9 : vector<8x50xf32>
    %12 = math.exp %11 : vector<8x50xf32>
    %13 = math.log1p %12 : vector<8x50xf32>
    %14 = arith.addf %8, %13 : vector<8x50xf32>
    %15 = vector.extract_strided_slice %2 {offsets = [0, 50], sizes = [8, 4], strides = [1, 1]} : vector<8x54xf32> to vector<8x4xf32>
    %c0_7 = arith.constant 0 : index
    %c0_8 = arith.constant 0 : index
    %16 = vector.load %arg4[%c0_7, %c0_8] : memref<50x4xf32, #tpu.memory_space<vmem>>, vector<50x4xf32>
    %cst_9 = arith.constant dense<0.000000e+00> : vector<8x4xf32>
    %17 = tpu.matmul %14, %16, %cst_9 {dimension_numbers = #tpu.dot_dimension_numbers<[1], [0], [0], [1], [0, 0, 1, 1], [], []>} : vector<8x50xf32>, vector<50x4xf32>, vector<8x4xf32> -> vector<8x4xf32>
    %18 = arith.addf %17, %15 : vector<8x4xf32>
    %c0_10 = arith.constant 0 : index
    %c0_11 = arith.constant 0 : index
    %19 = vector.load %arg5[%c0_10, %c0_11] : memref<1x4xf32, #tpu.memory_space<vmem>>, vector<1x4xf32>
    %20 = vector.broadcast %19 : vector<1x4xf32> to vector<8x4xf32>
    %21 = arith.addf %18, %20 : vector<8x4xf32>
    %c0_12 = arith.constant 0 : index
    %c0_13 = arith.constant 0 : index
    %22 = vector.load %arg6[%c0_12, %c0_13] : memref<8x4xf32, #tpu.memory_space<vmem>>, vector<8x4xf32>
    tpu.vector_store %arg6[%c0_12, %c0_13], %21 {strides = array<i32>} : memref<8x4xf32, #tpu.memory_space<vmem>>, vector<8x4xf32>,
    return
  }
  func.func @transform_0(%arg0: i32) -> (i32, i32) {
    %c0_i32 = arith.constant 0 : i32
    %c0_i32_0 = arith.constant 0 : i32
    return %arg0, %c0_i32 : i32, i32
  }
  func.func @transform_1(%arg0: i32) -> (i32, i32) {
    %c0_i32 = arith.constant 0 : i32
    %c0_i32_0 = arith.constant 0 : i32
    %c0_i32_1 = arith.constant 0 : i32
    return %c0_i32, %c0_i32_0 : i32, i32
  }
  func.func @transform_2(%arg0: i32) -> (i32, i32) {
    %c0_i32 = arith.constant 0 : i32
    %c0_i32_0 = arith.constant 0 : i32
    %c0_i32_1 = arith.constant 0 : i32
    return %c0_i32, %c0_i32_0 : i32, i32
  }
  func.func @transform_3(%arg0: i32) -> (i32, i32) {
    %c0_i32 = arith.constant 0 : i32
    %c0_i32_0 = arith.constant 0 : i32
    %c0_i32_1 = arith.constant 0 : i32
    return %c0_i32, %c0_i32_0 : i32, i32
  }
  func.func @transform_4(%arg0: i32) -> (i32, i32) {
    %c0_i32 = arith.constant 0 : i32
    %c0_i32_0 = arith.constant 0 : i32
    %c0_i32_1 = arith.constant 0 : i32
    return %c0_i32, %c0_i32_0 : i32, i32
  }
  func.func @transform_5(%arg0: i32) -> (i32, i32) {
    %c0_i32 = arith.constant 0 : i32
    %c0_i32_0 = arith.constant 0 : i32
    return %arg0, %c0_i32 : i32, i32
  }
}

</mosaic_0001>

<llo_original>
// kernel: tpu_custom_call.1
$region0: #{tpu_custom_call.1}
  #allocation0 [shape = 'u32[]', space=smem, size = 0x4, offset = 0x4, fixed_abs, tag = 'smem constant byte address 0x4 - core index']
  #allocation1 [shape = 'u32[144,128]{1,0:T(1,128)}', space=vmem, size = 0x12000, scoped, tag = 'internal scratch']
  %s0 = inlined_call_operand.vmem [shape: f32[8,48], index: 0, kind: input, shape index: {}]
  %s1 = inlined_call_operand.vmem [shape: f32[48,54], index: 1, kind: input, shape index: {}]
  %s2 = inlined_call_operand.vmem [shape: f32[1,50], index: 2, kind: input, shape index: {}]
  %s3 = inlined_call_operand.vmem [shape: f32[50,4], index: 3, kind: input, shape index: {}]
  %s4 = inlined_call_operand.vmem [shape: f32[1,4], index: 4, kind: input, shape index: {}]
  %s5 = inlined_call_operand.vmem [shape: f32[8,4], index: 5, kind: output, shape index: {}]
  %s6 = sld [smem:[#allocation0]]
  $region30: #{tpu_custom_call.1} parent=0
    _
  %s8 = ssub.s32 1, %s6
  %s9 = scalar_select 0, %s8, %s6
  // Predicated region
  $region2: #{tpu_custom_call.1} parent=0 // pred_check
    _
  $region3: #{tpu_custom_call.1} parent=0 // pred_check_branch
    %11 = sbr.rel (0) target = $region5
  $region4: #{tpu_custom_call.1} parent=0 // pred_region
    _
  $region5: #{tpu_custom_call.1} parent=0 // pred_fallthru
    _
  // Predicated region
  $region6: #{tpu_custom_call.1} parent=0 // pred_check
    _
  $region7: #{tpu_custom_call.1} parent=0 // pred_check_branch
    %13 = sbr.rel (0) target = $region9
  $region8: #{tpu_custom_call.1} parent=0 // pred_region
    _
  $region9: #{tpu_custom_call.1} parent=0 // pred_fallthru
    _
  // Predicated region
  $region10: #{tpu_custom_call.1} parent=0 // pred_check
    _
  $region11: #{tpu_custom_call.1} parent=0 // pred_check_branch
    %15 = sbr.rel (0) target = $region13
  $region12: #{tpu_custom_call.1} parent=0 // pred_region
    _
  $region13: #{tpu_custom_call.1} parent=0 // pred_fallthru
    _
  // Predicated region
  $region14: #{tpu_custom_call.1} parent=0 // pred_check
    _
  $region15: #{tpu_custom_call.1} parent=0 // pred_check_branch
    %17 = sbr.rel (0) target = $region17
  $region16: #{tpu_custom_call.1} parent=0 // pred_region
    _
  $region17: #{tpu_custom_call.1} parent=0 // pred_fallthru
    _
  // Predicated region
  $region18: #{tpu_custom_call.1} parent=0 // pred_check
    _
  $region19: #{tpu_custom_call.1} parent=0 // pred_check_branch
    %19 = sbr.rel (0) target = $region21
  $region20: #{tpu_custom_call.1} parent=0 // pred_region
    _
  $region21: #{tpu_custom_call.1} parent=0 // pred_fallthru
    _
  %v20 = vld [vmem:[%s0] sm:$0xff]
  %v21 = vld [vmem:[%s1] sm:$0xff]
  %v22 = vld [vmem:[%s1 + $0x8] sm:$0xff]
  %v23 = vld [vmem:[%s1 + $0x10] sm:$0xff]
  %v24 = vld [vmem:[%s1 + $0x18] sm:$0xff]
  %v25 = vld [vmem:[%s1 + $0x20] sm:$0xff]
  %v26 = vld [vmem:[%s1 + $0x28] sm:$0xff]
  %vm27 = vcmask 392192
  %v29 = vsel %vm27, %v20, 0
  %31 = vmatprep.subr.mxu0 0.0
  %32 = vmatpush1.msra.mxu0 %v21
  %33 = vmatprep.subr.mxu0 0.0
  %34 = vmatpush1.msra.mxu0 %v22
  %35 = vmatprep.subr.mxu0 0.0
  %36 = vmatpush1.msra.mxu0 %v23
  %37 = vmatprep.subr.mxu0 0.0
  %38 = vmatpush1.msra.mxu0 %v24
  %39 = vmatprep.subr.mxu0 0.0
  %40 = vmatpush1.msra.mxu0 %v25
  %41 = vmatprep.subr.mxu0 0.0
  %42 = vmatpush1.msra.mxu0 %v26
  %43 = vmatprep.subr.mxu0 0.0
  %44 = vmatpush1.msra.mxu0 0.0
  %45 = vmatprep.subr.mxu0 0.0
  %46 = vmatpush1.msra.mxu0 0.0
  %47 = vmatprep.subr.mxu0 0.0
  %48 = vmatpush1.msra.mxu0 0.0
  %49 = vmatprep.subr.mxu0 0.0
  %50 = vmatpush1.msra.mxu0 0.0
  %51 = vmatprep.subr.mxu0 0.0
  %52 = vmatpush1.msra.mxu0 0.0
  %53 = vmatprep.subr.mxu0 0.0
  %54 = vmatpush1.msra.mxu0 0.0
  %55 = vmatprep.subr.mxu0 0.0
  %56 = vmatpush1.msra.mxu0 0.0
  %57 = vmatprep.subr.mxu0 0.0
  %58 = vmatpush1.msra.mxu0 0.0
  %59 = vmatprep.subr.mxu0 0.0
  %60 = vmatpush1.msra.mxu0 0.0
  %61 = vmatprep.subr.mxu0 0.0
  %62 = vmatpush1.msra.mxu0 0.0
  %63 = vmatprep.subr.mxu0 0.0
  %64 = vmatpush1.msra.mxu0 0.0
  %65 = vmatprep.subr.mxu0 0.0
  %66 = vmatpush1.msra.mxu0 0.0
  %67 = vmatprep.subr.mxu0 0.0
  %68 = vmatpush1.msra.mxu0 0.0
  %69 = vmatprep.subr.mxu0 0.0
  %70 = vmatpush1.msra.mxu0 0.0
  %71 = vmatprep.subr.mxu0 0.0
  %72 = vmatpush1.msra.mxu0 0.0
  %73 = vmatprep.subr.mxu0 0.0
  %74 = vmatpush1.msra.mxu0 0.0
  %75 = vmatprep.subr.mxu0 0.0
  %76 = vmatpush1.msra.mxu0 0.0
  %77 = vmatprep.subr.mxu0 0.0
  %78 = vmatpush1.msra.mxu0 0.0
  %79 = vmatprep.subr.mxu0 0.0
  %80 = vmatpush1.msra.mxu0 0.0
  %81 = vmatprep.subr.mxu0 0.0
  %82 = vmatpush1.msra.mxu0 0.0
  %83 = vmatprep.subr.mxu0 0.0
  %84 = vmatpush1.msra.mxu0 0.0
  %85 = vmatprep.subr.mxu0 0.0
  %86 = vmatpush1.msra.mxu0 0.0
  %87 = vmatprep.subr.mxu0 0.0
  %88 = vmatpush1.msra.mxu0 0.0
  %89 = vmatprep.subr.mxu0 0.0
  %90 = vmatpush1.msra.mxu0 0.0
  %91 = vmatprep.subr.mxu0 0.0
  %92 = vmatpush1.msra.mxu0 0.0
  %93 = vmatprep.subr.mxu0 0.0
  %94 = vmatpush1.msra.mxu0 0.0
  %95 = vmatprep.mubr.f32.mxu0 0.0
  %96 = vmatmul.mubr.f32.gmra.mrb[0].mxu0 %v29
  %v97 = vpop.f32.mrb[0].mxu0
  %v98 = vadd.f32 0.0, %v97
  %v99 = vpop.f32.mrb[0].mxu0
  %100 = vdwg.mxu0
  %v101 = vld [vmem:[%s2] sm:$0x1]
  %v103 = vlaneseq
  %v104 = vshrl.u32 %v103, 7
  %v105 = vsub.s32 0, %v104
  %v106 = vrot.slane %v101, %v105
  %v108 = vadd.f32 %v98, %v106
  %v109 = vmax.f32 %v108, 0.0
  %v110 = vand.u32 2147483647, %v108
  %v111 = vsub.f32 0.0, %v110
  %v112 = vmul.f32 %v111, 1.442695
  %v113 = vpow.pop %v112
  %v114 = vadd.f32 %v113, 1.0
  %v115 = vlog2.pop %v114
  %v116 = vmul.f32 %v115, 0.6931472
  %v117 = vmul.f32 -0.5, %v113
  %v118 = vadd.f32 %v117, 1.0
  %v119 = vmul.f32 %v118, %v113
  %v120 = vand.u32 2147483647, %v113
  %vm121 = vcmp.lt.f32.partialorder %v120, 0.0004427343
  %v122 = vsel %vm121, %v119, %v116
  %v123 = vadd.f32 %v109, %v122
  %v124 = vld [vmem:[%s3] sm:$0xff]
  %v125 = vld [vmem:[%s3 + $0x8] sm:$0xff]
  %v126 = vld [vmem:[%s3 + $0x10] sm:$0xff]
  %v127 = vld [vmem:[%s3 + $0x18] sm:$0xff]
  %v128 = vld [vmem:[%s3 + $0x20] sm:$0xff]
  %v129 = vld [vmem:[%s3 + $0x28] sm:$0xff]
  %v130 = vld [vmem:[%s3 + $0x30] sm:$0x3]
  %132 = vrot.lane.b32.xlu0 %v98, 78
  %v133 = vpop.permute.xlu0 %132
  %vm135 = vcmask 408576
  %v137 = vsel %vm135, %v123, 0
  %vm139 = vcmask 1041408
  %v141 = vsel %vm139, %v130, 0
  %143 = vmatprep.subr.mxu0 0.0
  %144 = vmatpush1.msra.mxu0 %v124
  %145 = vmatprep.subr.mxu0 0.0
  %146 = vmatpush1.msra.mxu0 %v125
  %147 = vmatprep.subr.mxu0 0.0
  %148 = vmatpush1.msra.mxu0 %v126
  %149 = vmatprep.subr.mxu0 0.0
  %150 = vmatpush1.msra.mxu0 %v127
  %151 = vmatprep.subr.mxu0 0.0
  %152 = vmatpush1.msra.mxu0 %v128
  %153 = vmatprep.subr.mxu0 0.0
  %154 = vmatpush1.msra.mxu0 %v129
  %155 = vmatprep.subr.mxu0 0.0
  %156 = vmatpush1.msra.mxu0 %v141
  %157 = vmatprep.subr.mxu0 0.0
  %158 = vmatpush1.msra.mxu0 0.0
  %159 = vmatprep.subr.mxu0 0.0
  %160 = vmatpush1.msra.mxu0 0.0
  %161 = vmatprep.subr.mxu0 0.0
  %162 = vmatpush1.msra.mxu0 0.0
  %163 = vmatprep.subr.mxu0 0.0
  %164 = vmatpush1.msra.mxu0 0.0
  %165 = vmatprep.subr.mxu0 0.0
  %166 = vmatpush1.msra.mxu0 0.0
  %167 = vmatprep.subr.mxu0 0.0
  %168 = vmatpush1.msra.mxu0 0.0
  %169 = vmatprep.subr.mxu0 0.0
  %170 = vmatpush1.msra.mxu0 0.0
  %171 = vmatprep.subr.mxu0 0.0
  %172 = vmatpush1.msra.mxu0 0.0
  %173 = vmatprep.subr.mxu0 0.0
  %174 = vmatpush1.msra.mxu0 0.0
  %175 = vmatprep.subr.mxu0 0.0
  %176 = vmatpush1.msra.mxu0 0.0
  %177 = vmatprep.subr.mxu0 0.0
  %178 = vmatpush1.msra.mxu0 0.0
  %179 = vmatprep.subr.mxu0 0.0
  %180 = vmatpush1.msra.mxu0 0.0
  %181 = vmatprep.subr.mxu0 0.0
  %182 = vmatpush1.msra.mxu0 0.0
  %183 = vmatprep.subr.mxu0 0.0
  %184 = vmatpush1.msra.mxu0 0.0
  %185 = vmatprep.subr.mxu0 0.0
  %186 = vmatpush1.msra.mxu0 0.0
  %187 = vmatprep.subr.mxu0 0.0
  %188 = vmatpush1.msra.mxu0 0.0
  %189 = vmatprep.subr.mxu0 0.0
  %190 = vmatpush1.msra.mxu0 0.0
  %191 = vmatprep.subr.mxu0 0.0
  %192 = vmatpush1.msra.mxu0 0.0
  %193 = vmatprep.subr.mxu0 0.0
  %194 = vmatpush1.msra.mxu0 0.0
  %195 = vmatprep.subr.mxu0 0.0
  %196 = vmatpush1.msra.mxu0 0.0
  %197 = vmatprep.subr.mxu0 0.0
  %198 = vmatpush1.msra.mxu0 0.0
  %199 = vmatprep.subr.mxu0 0.0
  %200 = vmatpush1.msra.mxu0 0.0
  %201 = vmatprep.subr.mxu0 0.0
  %202 = vmatpush1.msra.mxu0 0.0
  %203 = vmatprep.subr.mxu0 0.0
  %204 = vmatpush1.msra.mxu0 0.0
  %205 = vmatprep.subr.mxu0 0.0
  %206 = vmatpush1.msra.mxu0 0.0
  %207 = vmatprep.mubr.f32.mxu0 0.0
  %208 = vmatmul.mubr.f32.gmra.mrb[0].mxu0 %v137
  %v209 = vpop.f32.mrb[0].mxu0
  %v210 = vadd.f32 %v133, %v209
  %v211 = vpop.f32.mrb[0].mxu0
  %212 = vdwg.mxu0
  %v213 = vld [vmem:[%s4] sm:$0x1]
  %v215 = vlaneseq
  %v216 = vshrl.u32 %v215, 7
  %v217 = vsub.s32 0, %v216
  %v218 = vrot.slane %v213, %v217
  %v220 = vadd.f32 %v210, %v218
  %vm221 = vcmask 31744
  %222 = vst.msk [vmem:[%s5] sm:$0xff] %vm221, %v220
  // Predicated region
  $region22: #{tpu_custom_call.1} parent=0 // pred_check
    _
  $region23: #{tpu_custom_call.1} parent=0 // pred_check_branch
    %224 = sbr.rel (0) target = $region25
  $region24: #{tpu_custom_call.1} parent=0 // pred_region
    _
  $region25: #{tpu_custom_call.1} parent=0 // pred_fallthru
    _
  // Predicated region
  $region26: #{tpu_custom_call.1} parent=0 // pred_check
    _
  $region27: #{tpu_custom_call.1} parent=0 // pred_check_branch
    %226 = sbr.rel (0) target = $region29
  $region28: #{tpu_custom_call.1} parent=0 // pred_region
    _
  $region29: #{tpu_custom_call.1} parent=0 // pred_fallthru
    _

</llo_original>
